<compile_context>
chip_gen: v7x
topology: tpu7x:2x2x1
jax: 0.10.0
libtpu: 0.0.40
codegen_flags: <defaults>
</compile_context>

<pallas_src>
import functools

import jax
import jax.numpy as jnp
import numpy as np
from jax import lax
from jax.experimental import pallas as pl
from jax.experimental.pallas import tpu as pltpu

NEG = -1e30  # finite "-inf" so NEG + finite never produces NaN


def _rnnt_loss_kernel(logit_lens_ref, y_lens_ref,        # scalar prefetch (SMEM)
                      logits_ref, labels_ref,            # VMEM blocks
                      loss_ref,                          # (1,1,1) per-batch output
                      blank_scr, label_scr,              # VMEM (U1, T_pad) scratch
                      *, blank_idx, n_t_tiles):
    b = pl.program_id(0)
    ti = pl.program_id(1)

    # ---------------- phase 1: streaming log-softmax + label gather ----------
    logits = logits_ref[0].astype(jnp.float32)           # (tT, U1, V)
    tT, U1, V = logits.shape

    m = jnp.max(logits, axis=-1, keepdims=True)
    lse = jnp.log(jnp.sum(jnp.exp(logits - m), axis=-1)) + m[..., 0]          # (tT, U1)
    blank_tile = logits[..., blank_idx] - lse                                  # (tT, U1)

    labels = labels_ref[0]                                # (U1, 1) int32, last row = -1
    v_iota = lax.broadcasted_iota(jnp.int32, (U1, V), 1)
    onehot = v_iota == labels                             # (U1, V) bool
    gathered = jnp.sum(jnp.where(onehot[None, :, :], logits, 0.0), axis=-1)    # (tT, U1)
    label_tile = gathered - lse

    # store transposed so the (large) T axis sits on lanes
    if n_t_tiles == 1:
        blank_scr[...] = blank_tile.T
        label_scr[...] = label_tile.T
    else:
        off = pl.multiple_of(ti * tT, tT)
        blank_scr[:, pl.ds(off, tT)] = blank_tile.T
        label_scr[:, pl.ds(off, tT)] = label_tile.T

    # ---------------- phase 2: forward DP once the whole sequence is resident
    @pl.when(ti == n_t_tiles - 1)
    def _dp():
        T_pad = blank_scr.shape[1]
        neg = jnp.float32(NEG)
        t_iota = lax.broadcasted_iota(jnp.int32, (1, T_pad), 1)   # hoisted invariant
        n_scan = max((T_pad - 1).bit_length(), 1)                 # static

        # inclusive scan of x[t] = b[t] (+)log (x[t-1] + a[t]),  x[-1] = -inf
        # affine-map pairs (A, B): x -> logaddexp(x + A, B); fully unrolled.
        def scan_t(a_vec, b_vec):
            A, B = a_vec, b_vec
            d = 1
            for _ in range(n_scan):
                A_sh = jnp.where(t_iota < d, 0.0, pltpu.roll(A, shift=d, axis=1))
                B_sh = jnp.where(t_iota < d, neg, pltpu.roll(B, shift=d, axis=1))
                A, B = A_sh + A, jnp.logaddexp(B_sh + A, B)
                d *= 2
            return B

        def shift_t(row):                                  # row[t-1] at position t
            return jnp.where(t_iota == 0, 0.0, pltpu.roll(row, shift=1, axis=1))

        # column u = 0: alpha[t,0] = sum_{t'<t} blank[t',0]
        b0 = jnp.where(t_iota == 0, 0.0, neg)
        col = scan_t(shift_t(blank_scr[pl.ds(0, 1), :]), b0)      # (1, T_pad)

        u_last = y_lens_ref[b]
        t_last = logit_lens_ref[b] - 1

        # column u: alpha[t,u] = logaddexp(alpha[t,u-1]+label[t,u-1],
        #                                  alpha[t-1,u]+blank[t-1,u])
        def u_body(u, c):
            b_vec = c + label_scr[pl.ds(u - 1, 1), :]
            a_vec = shift_t(blank_scr[pl.ds(u, 1), :])
            return scan_t(a_vec, b_vec)

        col = lax.fori_loop(1, u_last + 1, u_body, col)    # dynamic trip count

        # log P(y|x) = alpha[T_b-1, U_b] + blank[T_b-1, U_b]
        blank_last = blank_scr[pl.ds(u_last, 1), :]        # (1, T_pad)
        ll = jnp.sum(jnp.where(t_iota == t_last, col + blank_last, 0.0))
        loss_ref[...] = jnp.reshape(-ll, (1, 1, 1))


def rnnt_loss(logits, logit_lens, y, y_lens, *, blank_idx=0,
              t_tile_bytes=8 * 1024 * 1024):
    """Mean RNNT loss over the batch (matches torchaudio RNNTLoss defaults)."""
    # bf16 logits are streamed as-is (half the HBM bytes) and cast in-kernel.
    if logits.dtype != jnp.bfloat16:
        logits = logits.astype(jnp.float32)
    y = y.astype(jnp.int32)
    logit_lens = logit_lens.astype(jnp.int32)
    y_lens = y_lens.astype(jnp.int32)

    B, T, U1, V = logits.shape
    Umax = U1 - 1
    assert y.shape == (B, Umax)

    # ---- choose a T tile so the double-buffered logits block stays in VMEM
    bytes_per_t = U1 * V * logits.dtype.itemsize
    rows_budget = max(8, t_tile_bytes // max(bytes_per_t, 1))
    if rows_budget >= T:
        t_tile, n_t = T, 1
    else:
        t_tile = (rows_budget // 128) * 128 if rows_budget >= 128 else (rows_budget // 8) * 8
        t_tile = max(t_tile, 8)
        n_t = -(-T // t_tile)
    T_pad = t_tile * n_t
    if T_pad != T:
        logits = jnp.pad(logits, ((0, 0), (0, T_pad - T), (0, 0), (0, 0)))

    # labels as an int32 column; padded row (= -1) for the last lattice row u = Umax
    labels_col = jnp.concatenate(
        [y, jnp.full((B, 1), -1, jnp.int32)], axis=1).reshape(B, U1, 1)

    kernel = functools.partial(_rnnt_loss_kernel,
                               blank_idx=blank_idx, n_t_tiles=n_t)

    per_batch = pl.pallas_call(
        kernel,
        out_shape=jax.ShapeDtypeStruct((B, 1, 1), jnp.float32),
        grid_spec=pltpu.PrefetchScalarGridSpec(
            num_scalar_prefetch=2,                    # logit_lens, y_lens -> SMEM
            grid=(B, n_t),
            in_specs=[
                pl.BlockSpec((1, t_tile, U1, V), lambda b, t, ll, yl: (b, t, 0, 0)),
                pl.BlockSpec((1, U1, 1), lambda b, t, ll, yl: (b, 0, 0)),
            ],
            out_specs=pl.BlockSpec((1, 1, 1), lambda b, t, ll, yl: (b, 0, 0)),
            scratch_shapes=[
                pltpu.VMEM((U1, T_pad), jnp.float32),   # blank log-probs, T on lanes
                pltpu.VMEM((U1, T_pad), jnp.float32),   # label log-probs, T on lanes
            ],
        ),
        compiler_params=pltpu.CompilerParams(
            dimension_semantics=("parallel", "arbitrary"),
            vmem_limit_bytes=48 * 1024 * 1024,
        ),
    )(logit_lens, y_lens, logits, labels_col)

    return jnp.mean(per_batch[:, 0, 0])   # reduction='mean' over the batch


def _rnnt_loss_ref(logits, logit_lens, y, y_lens, blank_idx):
    """Pure numpy reference (float64) for validation."""
    logits = np.asarray(logits, np.float64)
    B = logits.shape[0]
    m = logits.max(-1, keepdims=True)
    logp = logits - (m + np.log(np.exp(logits - m).sum(-1, keepdims=True)))
    losses = []
    for b in range(B):
        Tb, Ub = int(logit_lens[b]), int(y_lens[b])
        alpha = np.full((Tb, Ub + 1), -np.inf)
        alpha[0, 0] = 0.0
        for t in range(Tb):
            for u in range(Ub + 1):
                if t == 0 and u == 0:
                    continue
                a = alpha[t - 1, u] + logp[b, t - 1, u, blank_idx] if t > 0 else -np.inf
                c = alpha[t, u - 1] + logp[b, t, u - 1, int(y[b, u - 1])] if u > 0 else -np.inf
                alpha[t, u] = np.logaddexp(a, c)
        losses.append(-(alpha[Tb - 1, Ub] + logp[b, Tb - 1, Ub, blank_idx]))
    return float(np.mean(losses))


if __name__ == "__main__":
    key = jax.random.PRNGKey(0)
    B, T, Umax, V = 2, 8, 4, 16   # logits: [batch, max_seq_len, max_target_len+1, vocab+1]
    blank_idx = 0

    k1, k2 = jax.random.split(key)
    logits = jax.random.normal(k1, (B, T, Umax + 1, V), dtype=jnp.float32)
    y = jax.random.randint(k2, (B, Umax), 1, V).astype(jnp.int32)   # targets never blank
    logit_lens = jnp.array([T, 6], dtype=jnp.int32)
    y_lens = jnp.array([Umax, 3], dtype=jnp.int32)

    loss = rnnt_loss(logits, logit_lens, y, y_lens, blank_idx=blank_idx)
    jax.block_until_ready(loss)

    ref = _rnnt_loss_ref(np.asarray(logits), np.asarray(logit_lens),
                         np.asarray(y), np.asarray(y_lens), blank_idx)
    assert abs(float(loss) - ref) <= 1e-3 * max(1.0, abs(ref)), (float(loss), ref)
    print("KERNEL_OK")
</pallas_src>

<mosaic_0001>
module attributes {stable_mosaic.version = 11 : i64} {
  func.func @_rnnt_loss_kernel(%arg0: i32, %arg1: i32, %arg2: memref<2xi32, #tpu.memory_space<smem>>, %arg3: memref<2xi32, #tpu.memory_space<smem>>, %arg4: memref<1x8x5x16xf32, #tpu.memory_space<vmem>>, %arg5: memref<1x5x1xi32, #tpu.memory_space<vmem>>, %arg6: memref<1x1x1xf32, #tpu.memory_space<vmem>>, %arg7: memref<5x8xf32, #tpu.memory_space<vmem>>, %arg8: memref<5x8xf32, #tpu.memory_space<vmem>>) attributes {dimension_semantics = [#tpu.dimension_semantics<parallel>, #tpu.dimension_semantics<arbitrary>], iteration_bounds = array<i64: 2, 1>, scalar_prefetch = 2 : i64, scratch_operands = 2 : i64, tpu.core_type = #tpu.core_type<tc>, window_params = [{transform_indices = @transform_0, window_bounds = array<i64: 1, 8, 5, 16>}, {transform_indices = @transform_1, window_bounds = array<i64: 1, 5, 1>}, {transform_indices = @transform_2, window_bounds = array<i64: 1, 1, 1>}]} {
    %c0 = arith.constant 0 : index
    %c0_0 = arith.constant 0 : index
    %c0_1 = arith.constant 0 : index
    %c0_2 = arith.constant 0 : index
    %0 = vector.load %arg4[%c0, %c0_0, %c0_1, %c0_2] : memref<1x8x5x16xf32, #tpu.memory_space<vmem>>, vector<1x8x5x16xf32>
    %1 = vector.shape_cast %0 : vector<1x8x5x16xf32> to vector<8x5x16xf32>
    %cst = arith.constant dense<0xFF800000> : vector<8x5xf32>
    %2 = vector.multi_reduction <maximumf>, %1, %cst [2] : vector<8x5x16xf32> to vector<8x5xf32>
    %3 = vector.shape_cast %2 : vector<8x5xf32> to vector<8x5x1xf32>
    %4 = vector.broadcast %3 : vector<8x5x1xf32> to vector<8x5x16xf32>
    %5 = arith.subf %1, %4 : vector<8x5x16xf32>
    %6 = math.exp %5 : vector<8x5x16xf32>
    %cst_3 = arith.constant dense<0.000000e+00> : vector<8x5xf32>
    %7 = vector.multi_reduction <add>, %6, %cst_3 [2] : vector<8x5x16xf32> to vector<8x5xf32>
    %8 = math.log %7 : vector<8x5xf32>
    %9 = vector.shape_cast %3 : vector<8x5x1xf32> to vector<8x5xf32>
    %10 = arith.addf %8, %9 : vector<8x5xf32>
    %11 = vector.extract_strided_slice %1 {offsets = [0, 0, 0], sizes = [8, 5, 1], strides = [1, 1, 1]} : vector<8x5x16xf32> to vector<8x5x1xf32>
    %12 = vector.shape_cast %11 : vector<8x5x1xf32> to vector<8x5xf32>
    %13 = arith.subf %12, %10 : vector<8x5xf32>
    %c0_4 = arith.constant 0 : index
    %c0_5 = arith.constant 0 : index
    %c0_6 = arith.constant 0 : index
    %14 = vector.load %arg5[%c0_4, %c0_5, %c0_6] : memref<1x5x1xi32, #tpu.memory_space<vmem>>, vector<1x5x1xi32>
    %15 = vector.shape_cast %14 : vector<1x5x1xi32> to vector<5x1xi32>
    %16 = tpu.iota {dimensions = array<i32: 1>} : vector<5x16xi32>
    %17 = vector.broadcast %15 : vector<5x1xi32> to vector<5x16xi32>
    %18 = arith.cmpi eq, %16, %17 : vector<5x16xi32>
    %19 = vector.shape_cast %18 : vector<5x16xi1> to vector<1x5x16xi1>
    %cst_7 = arith.constant 0.000000e+00 : f32
    %20 = vector.shape_cast %19 : vector<1x5x16xi1> to vector<1x5x16xi1>
    %21 = vector.broadcast %20 : vector<1x5x16xi1> to vector<8x5x16xi1>
    %22 = vector.broadcast %cst_7 : f32 to vector<8x5x16xf32>
    %23 = arith.select %21, %1, %22 : vector<8x5x16xi1>, vector<8x5x16xf32>
    %cst_8 = arith.constant dense<0.000000e+00> : vector<8x5xf32>
    %24 = vector.multi_reduction <add>, %23, %cst_8 [2] : vector<8x5x16xf32> to vector<8x5xf32>
    %25 = arith.subf %24, %10 : vector<8x5xf32>
    %26 = tpu.transpose %13, [1, 0] : vector<8x5xf32> -> vector<5x8xf32>
    %c0_9 = arith.constant 0 : index
    %c0_10 = arith.constant 0 : index
    %27 = vector.load %arg7[%c0_9, %c0_10] : memref<5x8xf32, #tpu.memory_space<vmem>>, vector<5x8xf32>
    tpu.vector_store %arg7[%c0_9, %c0_10], %26 {strides = array<i32>} : memref<5x8xf32, #tpu.memory_space<vmem>>, vector<5x8xf32>,
    %28 = tpu.transpose %25, [1, 0] : vector<8x5xf32> -> vector<5x8xf32>
    %c0_11 = arith.constant 0 : index
    %c0_12 = arith.constant 0 : index
    %29 = vector.load %arg8[%c0_11, %c0_12] : memref<5x8xf32, #tpu.memory_space<vmem>>, vector<5x8xf32>
    tpu.vector_store %arg8[%c0_11, %c0_12], %28 {strides = array<i32>} : memref<5x8xf32, #tpu.memory_space<vmem>>, vector<5x8xf32>,
    %c0_i32 = arith.constant 0 : i32
    %30 = arith.cmpi eq, %arg1, %c0_i32 : i32
    %31 = arith.extui %30 : i1 to i32
    %c0_i32_13 = arith.constant 0 : i32
    %32 = arith.cmpi ne, %31, %c0_i32_13 : i32
    scf.if %32 {
      %33 = tpu.iota {dimensions = array<i32: 1>} : vector<1x8xi32>
      %c0_i32_14 = arith.constant 0 : i32
      %34 = vector.broadcast %c0_i32_14 : i32 to vector<1x8xi32>
      %35 = arith.cmpi eq, %33, %34 : vector<1x8xi32>
      %cst_15 = arith.constant 0.000000e+00 : f32
      %cst_16 = arith.constant -1.000000e+30 : f32
      %36 = vector.broadcast %cst_15 : f32 to vector<1x8xf32>
      %37 = vector.broadcast %cst_16 : f32 to vector<1x8xf32>
      %38 = arith.select %35, %36, %37 : vector<1x8xi1>, vector<1x8xf32>
      %c0_17 = arith.constant 0 : index
      %c0_18 = arith.constant 0 : index
      %39 = vector.load %arg7[%c0_17, %c0_18] : memref<5x8xf32, #tpu.memory_space<vmem>>, vector<1x8xf32>
      %c0_i32_19 = arith.constant 0 : i32
      %40 = vector.broadcast %c0_i32_19 : i32 to vector<1x8xi32>
      %41 = arith.cmpi eq, %33, %40 : vector<1x8xi32>
      %c1_i32 = arith.constant 1 : i32
      %42 = tpu.dynamic_rotate %39 by %c1_i32 dim 1 : vector<1x8xf32>, i32 -> vector<1x8xf32>
      %cst_20 = arith.constant 0.000000e+00 : f32
      %43 = vector.broadcast %cst_20 : f32 to vector<1x8xf32>
      %44 = arith.select %41, %43, %42 : vector<1x8xi1>, vector<1x8xf32>
      %c1_i32_21 = arith.constant 1 : i32
      %45 = vector.broadcast %c1_i32_21 : i32 to vector<1x8xi32>
      %46 = arith.cmpi slt, %33, %45 : vector<1x8xi32>
      %c1_i32_22 = arith.constant 1 : i32
      %47 = tpu.dynamic_rotate %44 by %c1_i32_22 dim 1 : vector<1x8xf32>, i32 -> vector<1x8xf32>
      %cst_23 = arith.constant 0.000000e+00 : f32
      %48 = vector.broadcast %cst_23 : f32 to vector<1x8xf32>
      %49 = arith.select %46, %48, %47 : vector<1x8xi1>, vector<1x8xf32>
      %c1_i32_24 = arith.constant 1 : i32
      %50 = vector.broadcast %c1_i32_24 : i32 to vector<1x8xi32>
      %51 = arith.cmpi slt, %33, %50 : vector<1x8xi32>
      %c1_i32_25 = arith.constant 1 : i32
      %52 = tpu.dynamic_rotate %38 by %c1_i32_25 dim 1 : vector<1x8xf32>, i32 -> vector<1x8xf32>
      %cst_26 = arith.constant -1.000000e+30 : f32
      %53 = vector.broadcast %cst_26 : f32 to vector<1x8xf32>
      %54 = arith.select %51, %53, %52 : vector<1x8xi1>, vector<1x8xf32>
      %55 = arith.addf %49, %44 : vector<1x8xf32>
      %56 = arith.addf %54, %44 : vector<1x8xf32>
      %57 = arith.maximumf %56, %38 : vector<1x8xf32>
      %58 = arith.subf %56, %38 : vector<1x8xf32>
      %59 = arith.cmpf one, %58, %58 : vector<1x8xf32>
      %60 = arith.addf %56, %38 : vector<1x8xf32>
      %61 = math.absf %58 : vector<1x8xf32>
      %cst_27 = arith.constant 0.000000e+00 : f32
      %62 = vector.broadcast %cst_27 : f32 to vector<1x8xf32>
      %63 = arith.subf %62, %61 : vector<1x8xf32>
      %64 = math.exp %63 : vector<1x8xf32>
      %65 = math.log1p %64 : vector<1x8xf32>
      %66 = arith.addf %57, %65 : vector<1x8xf32>
      %67 = arith.select %59, %60, %66 : vector<1x8xi1>, vector<1x8xf32>
      %c2_i32 = arith.constant 2 : i32
      %68 = vector.broadcast %c2_i32 : i32 to vector<1x8xi32>
      %69 = arith.cmpi slt, %33, %68 : vector<1x8xi32>
      %c2_i32_28 = arith.constant 2 : i32
      %70 = tpu.dynamic_rotate %55 by %c2_i32_28 dim 1 : vector<1x8xf32>, i32 -> vector<1x8xf32>
      %cst_29 = arith.constant 0.000000e+00 : f32
      %71 = vector.broadcast %cst_29 : f32 to vector<1x8xf32>
      %72 = arith.select %69, %71, %70 : vector<1x8xi1>, vector<1x8xf32>
      %c2_i32_30 = arith.constant 2 : i32
      %73 = vector.broadcast %c2_i32_30 : i32 to vector<1x8xi32>
      %74 = arith.cmpi slt, %33, %73 : vector<1x8xi32>
      %c2_i32_31 = arith.constant 2 : i32
      %75 = tpu.dynamic_rotate %67 by %c2_i32_31 dim 1 : vector<1x8xf32>, i32 -> vector<1x8xf32>
      %cst_32 = arith.constant -1.000000e+30 : f32
      %76 = vector.broadcast %cst_32 : f32 to vector<1x8xf32>
      %77 = arith.select %74, %76, %75 : vector<1x8xi1>, vector<1x8xf32>
      %78 = arith.addf %72, %55 : vector<1x8xf32>
      %79 = arith.addf %77, %55 : vector<1x8xf32>
      %80 = arith.maximumf %79, %67 : vector<1x8xf32>
      %81 = arith.subf %79, %67 : vector<1x8xf32>
      %82 = arith.cmpf one, %81, %81 : vector<1x8xf32>
      %83 = arith.addf %79, %67 : vector<1x8xf32>
      %84 = math.absf %81 : vector<1x8xf32>
      %cst_33 = arith.constant 0.000000e+00 : f32
      %85 = vector.broadcast %cst_33 : f32 to vector<1x8xf32>
      %86 = arith.subf %85, %84 : vector<1x8xf32>
      %87 = math.exp %86 : vector<1x8xf32>
      %88 = math.log1p %87 : vector<1x8xf32>
      %89 = arith.addf %80, %88 : vector<1x8xf32>
      %90 = arith.select %82, %83, %89 : vector<1x8xi1>, vector<1x8xf32>
      %c4_i32 = arith.constant 4 : i32
      %91 = vector.broadcast %c4_i32 : i32 to vector<1x8xi32>
      %92 = arith.cmpi slt, %33, %91 : vector<1x8xi32>
      %c4_i32_34 = arith.constant 4 : i32
      %93 = tpu.dynamic_rotate %90 by %c4_i32_34 dim 1 : vector<1x8xf32>, i32 -> vector<1x8xf32>
      %cst_35 = arith.constant -1.000000e+30 : f32
      %94 = vector.broadcast %cst_35 : f32 to vector<1x8xf32>
      %95 = arith.select %92, %94, %93 : vector<1x8xi1>, vector<1x8xf32>
      %96 = arith.addf %95, %78 : vector<1x8xf32>
      %97 = arith.maximumf %96, %90 : vector<1x8xf32>
      %98 = arith.subf %96, %90 : vector<1x8xf32>
      %99 = arith.cmpf one, %98, %98 : vector<1x8xf32>
      %100 = arith.addf %96, %90 : vector<1x8xf32>
      %101 = math.absf %98 : vector<1x8xf32>
      %cst_36 = arith.constant 0.000000e+00 : f32
      %102 = vector.broadcast %cst_36 : f32 to vector<1x8xf32>
      %103 = arith.subf %102, %101 : vector<1x8xf32>
      %104 = math.exp %103 : vector<1x8xf32>
      %105 = math.log1p %104 : vector<1x8xf32>
      %106 = arith.addf %97, %105 : vector<1x8xf32>
      %107 = arith.select %99, %100, %106 : vector<1x8xi1>, vector<1x8xf32>
      %108 = arith.index_cast %arg0 : i32 to index
      %109 = memref.load %arg3[%108] : memref<2xi32, #tpu.memory_space<smem>>
      %110 = arith.index_cast %arg0 : i32 to index
      %111 = memref.load %arg2[%110] : memref<2xi32, #tpu.memory_space<smem>>
      %c1_i32_37 = arith.constant 1 : i32
      %112 = arith.subi %111, %c1_i32_37 : i32
      %c1_i32_38 = arith.constant 1 : i32
      %113 = arith.addi %109, %c1_i32_38 : i32
      %cst_39 = arith.constant -1.000000e+30 : f32
      %c1_i32_40 = arith.constant 1 : i32
      %114 = arith.subi %113, %c1_i32_40 : i32
      %115 = arith.addi %c1_i32_40, %114 : i32
      %c1_i32_41 = arith.constant 1 : i32
      %116 = scf.for %arg9 = %c1_i32_40 to %115 step %c1_i32_41 iter_args(%arg10 = %107) -> (vector<1x8xf32>)  : i32 {
        %c1_i32_49 = arith.constant 1 : i32
        %131 = arith.subi %arg9, %c1_i32_49 : i32
        %132 = arith.index_cast %131 : i32 to index
        %c0_50 = arith.constant 0 : index
        %133 = vector.load %arg8[%132, %c0_50] : memref<5x8xf32, #tpu.memory_space<vmem>>, vector<1x8xf32>
        %134 = arith.addf %arg10, %133 : vector<1x8xf32>
        %135 = arith.index_cast %arg9 : i32 to index
        %c0_51 = arith.constant 0 : index
        %136 = vector.load %arg7[%135, %c0_51] : memref<5x8xf32, #tpu.memory_space<vmem>>, vector<1x8xf32>
        %c0_i32_52 = arith.constant 0 : i32
        %137 = vector.broadcast %c0_i32_52 : i32 to vector<1x8xi32>
        %138 = arith.cmpi eq, %33, %137 : vector<1x8xi32>
        %c1_i32_53 = arith.constant 1 : i32
        %139 = tpu.dynamic_rotate %136 by %c1_i32_53 dim 1 : vector<1x8xf32>, i32 -> vector<1x8xf32>
        %cst_54 = arith.constant 0.000000e+00 : f32
        %140 = vector.broadcast %cst_54 : f32 to vector<1x8xf32>
        %141 = arith.select %138, %140, %139 : vector<1x8xi1>, vector<1x8xf32>
        %c1_i32_55 = arith.constant 1 : i32
        %142 = vector.broadcast %c1_i32_55 : i32 to vector<1x8xi32>
        %143 = arith.cmpi slt, %33, %142 : vector<1x8xi32>
        %c1_i32_56 = arith.constant 1 : i32
        %144 = tpu.dynamic_rotate %141 by %c1_i32_56 dim 1 : vector<1x8xf32>, i32 -> vector<1x8xf32>
        %cst_57 = arith.constant 0.000000e+00 : f32
        %145 = vector.broadcast %cst_57 : f32 to vector<1x8xf32>
        %146 = arith.select %143, %145, %144 : vector<1x8xi1>, vector<1x8xf32>
        %c1_i32_58 = arith.constant 1 : i32
        %147 = vector.broadcast %c1_i32_58 : i32 to vector<1x8xi32>
        %148 = arith.cmpi slt, %33, %147 : vector<1x8xi32>
        %c1_i32_59 = arith.constant 1 : i32
        %149 = tpu.dynamic_rotate %134 by %c1_i32_59 dim 1 : vector<1x8xf32>, i32 -> vector<1x8xf32>
        %150 = vector.broadcast %cst_39 : f32 to vector<1x8xf32>
        %151 = arith.select %148, %150, %149 : vector<1x8xi1>, vector<1x8xf32>
        %152 = arith.addf %146, %141 : vector<1x8xf32>
        %153 = arith.addf %151, %141 : vector<1x8xf32>
        %154 = arith.maximumf %153, %134 : vector<1x8xf32>
        %155 = arith.subf %153, %134 : vector<1x8xf32>
        %156 = arith.cmpf one, %155, %155 : vector<1x8xf32>
        %157 = arith.addf %153, %134 : vector<1x8xf32>
        %158 = math.absf %155 : vector<1x8xf32>
        %cst_60 = arith.constant 0.000000e+00 : f32
        %159 = vector.broadcast %cst_60 : f32 to vector<1x8xf32>
        %160 = arith.subf %159, %158 : vector<1x8xf32>
        %161 = math.exp %160 : vector<1x8xf32>
        %162 = math.log1p %161 : vector<1x8xf32>
        %163 = arith.addf %154, %162 : vector<1x8xf32>
        %164 = arith.select %156, %157, %163 : vector<1x8xi1>, vector<1x8xf32>
        %c2_i32_61 = arith.constant 2 : i32
        %165 = vector.broadcast %c2_i32_61 : i32 to vector<1x8xi32>
        %166 = arith.cmpi slt, %33, %165 : vector<1x8xi32>
        %c2_i32_62 = arith.constant 2 : i32
        %167 = tpu.dynamic_rotate %152 by %c2_i32_62 dim 1 : vector<1x8xf32>, i32 -> vector<1x8xf32>
        %cst_63 = arith.constant 0.000000e+00 : f32
        %168 = vector.broadcast %cst_63 : f32 to vector<1x8xf32>
        %169 = arith.select %166, %168, %167 : vector<1x8xi1>, vector<1x8xf32>
        %c2_i32_64 = arith.constant 2 : i32
        %170 = vector.broadcast %c2_i32_64 : i32 to vector<1x8xi32>
        %171 = arith.cmpi slt, %33, %170 : vector<1x8xi32>
        %c2_i32_65 = arith.constant 2 : i32
        %172 = tpu.dynamic_rotate %164 by %c2_i32_65 dim 1 : vector<1x8xf32>, i32 -> vector<1x8xf32>
        %173 = vector.broadcast %cst_39 : f32 to vector<1x8xf32>
        %174 = arith.select %171, %173, %172 : vector<1x8xi1>, vector<1x8xf32>
        %175 = arith.addf %169, %152 : vector<1x8xf32>
        %176 = arith.addf %174, %152 : vector<1x8xf32>
        %177 = arith.maximumf %176, %164 : vector<1x8xf32>
        %178 = arith.subf %176, %164 : vector<1x8xf32>
        %179 = arith.cmpf one, %178, %178 : vector<1x8xf32>
        %180 = arith.addf %176, %164 : vector<1x8xf32>
        %181 = math.absf %178 : vector<1x8xf32>
        %cst_66 = arith.constant 0.000000e+00 : f32
        %182 = vector.broadcast %cst_66 : f32 to vector<1x8xf32>
        %183 = arith.subf %182, %181 : vector<1x8xf32>
        %184 = math.exp %183 : vector<1x8xf32>
        %185 = math.log1p %184 : vector<1x8xf32>
        %186 = arith.addf %177, %185 : vector<1x8xf32>
        %187 = arith.select %179, %180, %186 : vector<1x8xi1>, vector<1x8xf32>
        %c4_i32_67 = arith.constant 4 : i32
        %188 = vector.broadcast %c4_i32_67 : i32 to vector<1x8xi32>
        %189 = arith.cmpi slt, %33, %188 : vector<1x8xi32>
        %c4_i32_68 = arith.constant 4 : i32
        %190 = tpu.dynamic_rotate %175 by %c4_i32_68 dim 1 : vector<1x8xf32>, i32 -> vector<1x8xf32>
        %cst_69 = arith.constant 0.000000e+00 : f32
        %191 = vector.broadcast %cst_69 : f32 to vector<1x8xf32>
        %192 = arith.select %189, %191, %190 : vector<1x8xi1>, vector<1x8xf32>
        %c4_i32_70 = arith.constant 4 : i32
        %193 = vector.broadcast %c4_i32_70 : i32 to vector<1x8xi32>
        %194 = arith.cmpi slt, %33, %193 : vector<1x8xi32>
        %c4_i32_71 = arith.constant 4 : i32
        %195 = tpu.dynamic_rotate %187 by %c4_i32_71 dim 1 : vector<1x8xf32>, i32 -> vector<1x8xf32>
        %196 = vector.broadcast %cst_39 : f32 to vector<1x8xf32>
        %197 = arith.select %194, %196, %195 : vector<1x8xi1>, vector<1x8xf32>
        %198 = arith.addf %192, %175 : vector<1x8xf32>
        %199 = arith.addf %197, %175 : vector<1x8xf32>
        %200 = arith.maximumf %199, %187 : vector<1x8xf32>
        %201 = arith.subf %199, %187 : vector<1x8xf32>
        %202 = arith.cmpf one, %201, %201 : vector<1x8xf32>
        %203 = arith.addf %199, %187 : vector<1x8xf32>
        %204 = math.absf %201 : vector<1x8xf32>
        %cst_72 = arith.constant 0.000000e+00 : f32
        %205 = vector.broadcast %cst_72 : f32 to vector<1x8xf32>
        %206 = arith.subf %205, %204 : vector<1x8xf32>
        %207 = math.exp %206 : vector<1x8xf32>
        %208 = math.log1p %207 : vector<1x8xf32>
        %209 = arith.addf %200, %208 : vector<1x8xf32>
        %210 = arith.select %202, %203, %209 : vector<1x8xi1>, vector<1x8xf32>
        scf.yield %210 : vector<1x8xf32>
      }
      %117 = arith.index_cast %109 : i32 to index
      %c0_42 = arith.constant 0 : index
      %118 = vector.load %arg7[%117, %c0_42] : memref<5x8xf32, #tpu.memory_space<vmem>>, vector<1x8xf32>
      %119 = vector.broadcast %112 : i32 to vector<1x8xi32>
      %120 = arith.cmpi eq, %33, %119 : vector<1x8xi32>
      %121 = arith.addf %116, %118 : vector<1x8xf32>
      %cst_43 = arith.constant 0.000000e+00 : f32
      %122 = vector.broadcast %cst_43 : f32 to vector<1x8xf32>
      %123 = arith.select %120, %121, %122 : vector<1x8xi1>, vector<1x8xf32>
      %124 = vector.shape_cast %123 : vector<1x8xf32> to vector<1x1x8xf32>
      %cst_44 = arith.constant dense<0.000000e+00> : vector<1xf32>
      %125 = vector.multi_reduction <add>, %124, %cst_44 [1, 2] : vector<1x1x8xf32> to vector<1xf32>
      %126 = vector.shape_cast %125 : vector<1xf32> to vector<1x1x1xf32>
      %127 = vector.extract %126[0, 0, 0] : f32 from vector<1x1x1xf32>
      %cst_45 = arith.constant 0.000000e+00 : f32
      %128 = arith.subf %cst_45, %127 : f32
      %129 = vector.broadcast %128 : f32 to vector<1x1x1xf32>
      %c0_46 = arith.constant 0 : index
      %c0_47 = arith.constant 0 : index
      %c0_48 = arith.constant 0 : index
      %130 = vector.load %arg6[%c0_46, %c0_47, %c0_48] : memref<1x1x1xf32, #tpu.memory_space<vmem>>, vector<1x1x1xf32>
      tpu.vector_store %arg6[%c0_46, %c0_47, %c0_48], %129 {strides = array<i32>} : memref<1x1x1xf32, #tpu.memory_space<vmem>>, vector<1x1x1xf32>,
    } else {
    }
    return
  }
  func.func @transform_0(%arg0: i32, %arg1: i32, %arg2: memref<2xi32, #tpu.memory_space<smem>>, %arg3: memref<2xi32, #tpu.memory_space<smem>>) -> (i32, i32, i32, i32) {
    %c0_i32 = arith.constant 0 : i32
    %c0_i32_0 = arith.constant 0 : i32
    %c0_i32_1 = arith.constant 0 : i32
    return %arg0, %arg1, %c0_i32, %c0_i32_0 : i32, i32, i32, i32
  }
  func.func @transform_1(%arg0: i32, %arg1: i32, %arg2: memref<2xi32, #tpu.memory_space<smem>>, %arg3: memref<2xi32, #tpu.memory_space<smem>>) -> (i32, i32, i32) {
    %c0_i32 = arith.constant 0 : i32
    %c0_i32_0 = arith.constant 0 : i32
    %c0_i32_1 = arith.constant 0 : i32
    return %arg0, %c0_i32, %c0_i32_0 : i32, i32, i32
  }
  func.func @transform_2(%arg0: i32, %arg1: i32, %arg2: memref<2xi32, #tpu.memory_space<smem>>, %arg3: memref<2xi32, #tpu.memory_space<smem>>) -> (i32, i32, i32) {
    %c0_i32 = arith.constant 0 : i32
    %c0_i32_0 = arith.constant 0 : i32
    %c0_i32_1 = arith.constant 0 : i32
    return %arg0, %c0_i32, %c0_i32_0 : i32, i32, i32
  }
}

</mosaic_0001>

<llo_original>
// kernel: tpu_custom_call.1
$region0: #{tpu_custom_call.1}
  #allocation0 [shape = 'u32[]', space=smem, size = 0x4, offset = 0x4, fixed_abs, tag = 'smem constant byte address 0x4 - core index']
  #allocation1 [shape = 'u32[144,128]{1,0:T(1,128)}', space=vmem, size = 0x12000, scoped, tag = 'internal scratch']
  #allocation2 [shape = 'f32[5,8]{1,0:T(8,128)}', space=vmem, size = 0x1000, scoped, tag = 'scratch operand']
  #allocation3 [shape = 'f32[5,8]{1,0:T(8,128)}', space=vmem, size = 0x1000, scoped, tag = 'scratch operand']
  #allocation4 [shape = 's32[1]{0}', space=sflag, size = 0x4, scoped, tag = 'scoped memory for tpu_custom_call.1']
  #allocation5 [shape = 'u8[512]{0}', space=smem, size = 0x200, scoped, tag = 'prefetched SMEM operand 0']
  #allocation6 [shape = 'u8[512]{0}', space=smem, size = 0x200, scoped, tag = 'prefetched SMEM operand 1']
  %s0 = inlined_call_operand.vmem [shape: s32[2], index: 0, kind: input, shape index: {}]
  %s1 = inlined_call_operand.vmem [shape: s32[2], index: 1, kind: input, shape index: {}]
  %s2 = inlined_call_operand.vmem [shape: f32[2,8,5,16], index: 2, kind: input, shape index: {}]
  %s3 = inlined_call_operand.vmem [shape: s32[2,5,1], index: 3, kind: input, shape index: {}]
  %s4 = inlined_call_operand.vmem [shape: f32[2,1,1], index: 4, kind: output, shape index: {}]
  %s5 = sld [smem:[#allocation0]]
  $region52: #{tpu_custom_call.1} parent=0
    _
  %s7 = ssub.s32 1, %s5
  %s8 = scalar_select 0, %s7, %s5
  %s9 = sshll.u32 %s0, 4
  %s10 = int_to_ptr.vmem [resolvable:$true] %s9
  %12 = dma.vmem_to_smem %s10, 16, [#allocation5], [#allocation4]
  %s13 = sshll.u32 %s1, 4
  %s14 = int_to_ptr.vmem [resolvable:$true] %s13
  %16 = dma.vmem_to_smem %s14, 16, [#allocation6], [#allocation4]
  %17 = dma.done [#allocation4], 32
  %18 = sfence
  loop: start=0, step=1, limit=4
  $region2: #{tpu_custom_call.1} parent=0 // loop_pre_header
    _
  $region3: #{tpu_custom_call.1} parent=0 // loop_header
    %s20 = sphi 0, %s24
    %p21 = scmp.ge.s32.totalorder %s20, 4
    %s27 = sphi 0, %s39
    %s28 = sphi 0, %s35
    %s29 = sphi 0, %s27
    %s30 = sphi 0, %s28
    %s31 = sphi 0, %s29
    %s32 = sphi 0, %s30
    %s44 = sphi 0, %s46
    %s47 = sphi 0, %s44
    %s48 = sphi 0, %s47
    %s64 = sphi 0, %s48
    %s70 = sphi 0, %s72
    %s73 = sphi 0, %s70
    %s74 = sphi 0, %s73
    %s90 = sphi 0, %s74
    %s96 = sphi 0, %s98
    %s99 = sphi 0, %s96
    %s100 = sphi 0, %s99
    %s116 = sphi 0, %s100
  $region4: #{tpu_custom_call.1} parent=0 // loop_header_branch
    %23 = sbr.rel (%p21) target = $region8
  $region5: #{tpu_custom_call.1} parent=0 // loop_body
    %s25 = ssub.s32 %s20, 1
    %s26 = ssub.s32 %s20, 2
    %s33 = sadd.s32 1, %s28
    %p34 = scmp.ge.s32.totalorder %s33, 1
    %s35 = scalar_select %p34, 0, %s33
    %s36 = sadd.s32 1, %s27
    %s37 = scalar_select %p34, %s36, %s27
    %p38 = scmp.ge.s32.totalorder %s37, 2
    %s39 = scalar_select %p38, 0, %s37
    %s40 = ssub.s32 %s27, %s39
    %s41 = ssub.s32 %s28, %s35
    %s42 = sor.u32 %s40, %s41
    %p43 = scmp.eq.s32.totalorder %s42, 0
    %s45 = sadd.s32 %s44, 1
    %s46 = scalar_select %p43, %s44, %s45
    %p49 = pneg %p43
    %p50 = scmp.eq.s32.totalorder %s20, 1
    %p51 = por %p49, %p50
    %p52 = scmp.ne.s32.totalorder %s44, %s47
    %p53 = scmp.eq.s32.totalorder %s20, 0
    %p54 = por %p52, %p53
    %p55 = scmp.ne.s32.totalorder %s44, %s47
    %p56 = scmp.eq.s32.totalorder %s25, 1
    %p57 = por %p55, %p56
    %p58 = scmp.ne.s32.totalorder %s47, %s48
    %p59 = scmp.eq.s32.totalorder %s25, 0
    %p60 = por %p58, %p59
    %p61 = scmp.ne.s32.totalorder %s47, %s48
    %p62 = scmp.eq.s32.totalorder %s26, 1
    %p63 = por %p61, %p62
    %p65 = scmp.ne.s32.totalorder %s48, %s64
    %p66 = scmp.eq.s32.totalorder %s26, 0
    %p67 = por %p65, %p66
    %s68 = ssub.s32 %s27, %s39
    %p69 = scmp.eq.s32.totalorder %s68, 0
    %s71 = sadd.s32 %s70, 1
    %s72 = scalar_select %p69, %s70, %s71
    %p75 = pneg %p69
    %p76 = scmp.eq.s32.totalorder %s20, 1
    %p77 = por %p75, %p76
    %p78 = scmp.ne.s32.totalorder %s70, %s73
    %p79 = scmp.eq.s32.totalorder %s20, 0
    %p80 = por %p78, %p79
    %p81 = scmp.ne.s32.totalorder %s70, %s73
    %p82 = scmp.eq.s32.totalorder %s25, 1
    %p83 = por %p81, %p82
    %p84 = scmp.ne.s32.totalorder %s73, %s74
    %p85 = scmp.eq.s32.totalorder %s25, 0
    %p86 = por %p84, %p85
    %p87 = scmp.ne.s32.totalorder %s73, %s74
    %p88 = scmp.eq.s32.totalorder %s26, 1
    %p89 = por %p87, %p88
    %p91 = scmp.ne.s32.totalorder %s74, %s90
    %p92 = scmp.eq.s32.totalorder %s26, 0
    %p93 = por %p91, %p92
    %s94 = ssub.s32 %s27, %s39
    %p95 = scmp.eq.s32.totalorder %s94, 0
    %s97 = sadd.s32 %s96, 1
    %s98 = scalar_select %p95, %s96, %s97
    %p101 = pneg %p95
    %p102 = scmp.eq.s32.totalorder %s20, 1
    %p103 = por %p101, %p102
    %p104 = scmp.ne.s32.totalorder %s96, %s99
    %p105 = scmp.eq.s32.totalorder %s20, 0
    %p106 = por %p104, %p105
    %p107 = scmp.ne.s32.totalorder %s96, %s99
    %p108 = scmp.eq.s32.totalorder %s25, 1
    %p109 = por %p107, %p108
    %p110 = scmp.ne.s32.totalorder %s99, %s100
    %p111 = scmp.eq.s32.totalorder %s25, 0
    %p112 = por %p110, %p111
    %p113 = scmp.ne.s32.totalorder %s99, %s100
    %p114 = scmp.eq.s32.totalorder %s26, 1
    %p115 = por %p113, %p114
    %p117 = scmp.ne.s32.totalorder %s100, %s116
    %p118 = scmp.eq.s32.totalorder %s26, 0
    %p119 = por %p117, %p118
    %p120 = scmp.le.s32.totalorder 1, %s20
    %p121 = scmp.lt.s32.totalorder %s20, 3
    %p122 = pnand %p120, %p121
    %p123 = pneg %p122
    // Predicated region
    $region9: #{tpu_custom_call.1} parent=5 // pred_check
      _
    $region10: #{tpu_custom_call.1} parent=5 // pred_check_branch
      %125 = sbr.rel (%p122) target = $region12
    $region11: #{tpu_custom_call.1} parent=5 // pred_region
      %s126 = ssub.s32 %s20, 1
    $region12: #{tpu_custom_call.1} parent=5 // pred_fallthru
      _
    %p127 = scmp.lt.s32.totalorder %s20, 2
    // Predicated region
    $region13: #{tpu_custom_call.1} parent=5 // pred_check
      %p128 = pneg %p127
    $region14: #{tpu_custom_call.1} parent=5 // pred_check_branch
      %130 = sbr.rel (%p128) target = $region16
    $region15: #{tpu_custom_call.1} parent=5 // pred_region
      // Predicated region
      $region17: #{tpu_custom_call.1} parent=15 // pred_check
        %p131 = pneg %p54
      $region18: #{tpu_custom_call.1} parent=15 // pred_check_branch
        %133 = sbr.rel (%p131) target = $region20
      $region19: #{tpu_custom_call.1} parent=15 // pred_region
        %s134 = smul.u32 8, %s28
        %p135 = scmp.lt.s32.totalorder %s27, 1
        %s136 = scalar_select %p135, %s27, 1
        %p137 = scmp.lt.s32.totalorder %s134, 7
        %s138 = scalar_select %p137, %s134, 7
        %s139 = smul.addr %s136, 8
        %s140 = sadd.s32 %s138, %s139
        %s141 = smul.addr %s140, 8
        %s142 = scalar_lea.vmem %s2, %s141
        %s143 = smul.u32 8, %s28
      $region20: #{tpu_custom_call.1} parent=15 // pred_fallthru
        _
      // Predicated region
      $region21: #{tpu_custom_call.1} parent=15 // pred_check
        %p144 = pneg %p80
      $region22: #{tpu_custom_call.1} parent=15 // pred_check_branch
        %146 = sbr.rel (%p144) target = $region24
      $region23: #{tpu_custom_call.1} parent=15 // pred_region
        %p147 = scmp.lt.s32.totalorder %s27, 1
        %s148 = scalar_select %p147, %s27, 1
        %s149 = smul.addr %s148, 8
        %s150 = scalar_lea.vmem %s3, %s149
      $region24: #{tpu_custom_call.1} parent=15 // pred_fallthru
        _
    $region16: #{tpu_custom_call.1} parent=5 // pred_fallthru
      _
    %p151 = scmp.le.s32.totalorder 1, %s20
    %p152 = scmp.lt.s32.totalorder %s20, 3
    %p153 = pnand %p151, %p152
    %p154 = pneg %p153
    // Predicated region
    $region25: #{tpu_custom_call.1} parent=5 // pred_check
      _
    $region26: #{tpu_custom_call.1} parent=5 // pred_check_branch
      %156 = sbr.rel (%p153) target = $region28
    $region27: #{tpu_custom_call.1} parent=5 // pred_region
      %s157 = ssub.s32 %s20, 1
      %s158 = smul.u32 8, %s30
      %p159 = scmp.lt.s32.totalorder %s29, 1
      %s160 = scalar_select %p159, %s29, 1
      %p161 = scmp.lt.s32.totalorder %s158, 7
      %s162 = scalar_select %p161, %s158, 7
      %s163 = smul.addr %s160, 8
      %s164 = sadd.s32 %s162, %s163
      %s165 = smul.addr %s164, 8
      %s166 = scalar_lea.vmem %s2, %s165
      %p167 = pneg %p60
      %p168 = pneg %p57
      %p169 = scmp.lt.s32.totalorder %s29, 1
      %s170 = scalar_select %p169, %s29, 1
      %s171 = smul.addr %s170, 8
      %s172 = scalar_lea.vmem %s3, %s171
      %p173 = pneg %p86
      %p174 = pneg %p83
      %p175 = pneg %p112
      %p176 = pneg %p109
      %p177 = scmp.lt.s32.totalorder %s29, 1
      %s178 = scalar_select %p177, %s29, 1
      %s179 = scalar_lea.vmem %s4, %s178
      %s180 = smul.u32 8, %s30
      %p181 = scmp.lt.s32.totalorder %s29, 1
      %s182 = scalar_select %p181, %s29, 1
      %p183 = scmp.lt.s32.totalorder %s180, 7
      %s184 = scalar_select %p183, %s180, 7
      %s185 = smul.addr %s182, 8
      %s186 = sadd.s32 %s184, %s185
      %s187 = smul.addr %s186, 8
      %s188 = scalar_lea.vmem %s2, %s187
      %s189 = smul.u32 8, %s30
      %p190 = scmp.lt.s32.totalorder %s29, 1
      %s191 = scalar_select %p190, %s29, 1
      %s192 = smul.addr %s191, 8
      %s193 = scalar_lea.vmem %s3, %s192
      %p194 = scmp.lt.s32.totalorder %s29, 1
      %s195 = scalar_select %p194, %s29, 1
      %s196 = scalar_lea.vmem %s4, %s195
      %v197 = vld [vmem:[%s188] sm:$0x1f]
      %v198 = vld [vmem:[%s188 + $0x8] sm:$0x1f]
      %v199 = vld [vmem:[%s188 + $0x10] sm:$0x1f]
      %v200 = vld [vmem:[%s188 + $0x18] sm:$0x1f]
      %v201 = vld [vmem:[%s188 + $0x20] sm:$0x1f]
      %v202 = vld [vmem:[%s188 + $0x28] sm:$0x1f]
      %v203 = vld [vmem:[%s188 + $0x30] sm:$0x1f]
      %v204 = vld [vmem:[%s188 + $0x38] sm:$0x1f]
      %vm205 = vcmask 126976
      %v206 = vsel %vm205, %v197, -inf
      %207 = vmax.xlane.f32.xlu0 %v206
      %v208 = vpop.xlane.xlu0 %207
      %v209 = vsel %vm205, %v198, -inf
      %210 = vmax.xlane.f32.xlu0 %v209
      %v211 = vpop.xlane.xlu0 %210
      %v212 = vsel %vm205, %v199, -inf
      %213 = vmax.xlane.f32.xlu0 %v212
      %v214 = vpop.xlane.xlu0 %213
      %v215 = vsel %vm205, %v200, -inf
      %216 = vmax.xlane.f32.xlu0 %v215
      %v217 = vpop.xlane.xlu0 %216
      %v218 = vsel %vm205, %v201, -inf
      %219 = vmax.xlane.f32.xlu0 %v218
      %v220 = vpop.xlane.xlu0 %219
      %v221 = vsel %vm205, %v202, -inf
      %222 = vmax.xlane.f32.xlu0 %v221
      %v223 = vpop.xlane.xlu0 %222
      %v224 = vsel %vm205, %v203, -inf
      %225 = vmax.xlane.f32.xlu0 %v224
      %v226 = vpop.xlane.xlu0 %225
      %v227 = vsel %vm205, %v204, -inf
      %228 = vmax.xlane.f32.xlu0 %v227
      %v229 = vpop.xlane.xlu0 %228
      %v230 = vsub.f32 %v197, %v208
      %v231 = vsub.f32 %v198, %v211
      %v232 = vsub.f32 %v199, %v214
      %v233 = vsub.f32 %v200, %v217
      %v234 = vsub.f32 %v201, %v220
      %v235 = vsub.f32 %v202, %v223
      %v236 = vsub.f32 %v203, %v226
      %v237 = vsub.f32 %v204, %v229
      %v238 = vmul.f32 %v230, 1.442695
      %v239 = vpow.pop %v238
      %v240 = vmul.f32 %v231, 1.442695
      %v241 = vpow.pop %v240
      %v242 = vmul.f32 %v232, 1.442695
      %v243 = vpow.pop %v242
      %v244 = vmul.f32 %v233, 1.442695
      %v245 = vpow.pop %v244
      %v246 = vmul.f32 %v234, 1.442695
      %v247 = vpow.pop %v246
      %v248 = vmul.f32 %v235, 1.442695
      %v249 = vpow.pop %v248
      %v250 = vmul.f32 %v236, 1.442695
      %v251 = vpow.pop %v250
      %v252 = vmul.f32 %v237, 1.442695
      %v253 = vpow.pop %v252
      %v254 = vsel %vm205, %v239, 0.0
      %255 = vadd.xlane.f32.xlu0 %v254
      %v256 = vpop.xlane.xlu0 %255
      %v257 = vsel %vm205, %v241, 0.0
      %258 = vadd.xlane.f32.xlu0 %v257
      %v259 = vpop.xlane.xlu0 %258
      %v260 = vsel %vm205, %v243, 0.0
      %261 = vadd.xlane.f32.xlu0 %v260
      %v262 = vpop.xlane.xlu0 %261
      %v263 = vsel %vm205, %v245, 0.0
      %264 = vadd.xlane.f32.xlu0 %v263
      %v265 = vpop.xlane.xlu0 %264
      %v266 = vsel %vm205, %v247, 0.0
      %267 = vadd.xlane.f32.xlu0 %v266
      %v268 = vpop.xlane.xlu0 %267
      %v269 = vsel %vm205, %v249, 0.0
      %270 = vadd.xlane.f32.xlu0 %v269
      %v271 = vpop.xlane.xlu0 %270
      %v272 = vsel %vm205, %v251, 0.0
      %273 = vadd.xlane.f32.xlu0 %v272
      %v274 = vpop.xlane.xlu0 %273
      %v275 = vsel %vm205, %v253, 0.0
      %276 = vadd.xlane.f32.xlu0 %v275
      %v277 = vpop.xlane.xlu0 %276
      %v278 = vlog2.pop %v256
      %v279 = vmul.f32 %v278, 0.6931472
      %v280 = vlog2.pop %v259
      %v281 = vmul.f32 %v280, 0.6931472
      %v282 = vlog2.pop %v262
      %v283 = vmul.f32 %v282, 0.6931472
      %v284 = vlog2.pop %v265
      %v285 = vmul.f32 %v284, 0.6931472
      %v286 = vlog2.pop %v268
      %v287 = vmul.f32 %v286, 0.6931472
      %v288 = vlog2.pop %v271
      %v289 = vmul.f32 %v288, 0.6931472
      %v290 = vlog2.pop %v274
      %v291 = vmul.f32 %v290, 0.6931472
      %v292 = vlog2.pop %v277
      %v293 = vmul.f32 %v292, 0.6931472
      %v294 = vadd.f32 %v279, %v208
      %v295 = vadd.f32 %v281, %v211
      %v296 = vadd.f32 %v283, %v214
      %v297 = vadd.f32 %v285, %v217
      %v298 = vadd.f32 %v287, %v220
      %v299 = vadd.f32 %v289, %v223
      %v300 = vadd.f32 %v291, %v226
      %v301 = vadd.f32 %v293, %v229
      %v302 = vsub.f32 %v197, %v294
      %v303 = vsub.f32 %v198, %v295
      %v304 = vsub.f32 %v199, %v296
      %v305 = vsub.f32 %v200, %v297
      %v306 = vsub.f32 %v201, %v298
      %v307 = vsub.f32 %v202, %v299
      %v308 = vsub.f32 %v203, %v300
      %v309 = vsub.f32 %v204, %v301
      %v310 = vld [vmem:[%s193] sm:$0x1f]
      %v311 = vlaneseq
      %v312 = vand.u32 %v311, 127
      %313 = vset.pattern.permute.xlu0 0
      %314 = vperm.xlu0 %313, %v310
      %v315 = vpop.permute.xlu0 %314
      %vm316 = vcmp.eq.s32.totalorder %v312, %v315
      %v317 = vsel %vm316, 1, 0
      %vm318 = vcmp.eq.s32.totalorder %v317, 1
      %v319 = vsel %vm318, %v197, 0.0
      %v320 = vsel %vm318, %v198, 0.0
      %v321 = vsel %vm318, %v199, 0.0
      %v322 = vsel %vm318, %v200, 0.0
      %v323 = vsel %vm318, %v201, 0.0
      %v324 = vsel %vm318, %v202, 0.0
      %v325 = vsel %vm318, %v203, 0.0
      %v326 = vsel %vm318, %v204, 0.0
      %v327 = vsel %vm205, %v319, 0.0
      %328 = vadd.xlane.f32.xlu0 %v327
      %v329 = vpop.xlane.xlu0 %328
      %v330 = vsel %vm205, %v320, 0.0
      %331 = vadd.xlane.f32.xlu0 %v330
      %v332 = vpop.xlane.xlu0 %331
      %v333 = vsel %vm205, %v321, 0.0
      %334 = vadd.xlane.f32.xlu0 %v333
      %v335 = vpop.xlane.xlu0 %334
      %v336 = vsel %vm205, %v322, 0.0
      %337 = vadd.xlane.f32.xlu0 %v336
      %v338 = vpop.xlane.xlu0 %337
      %v339 = vsel %vm205, %v323, 0.0
      %340 = vadd.xlane.f32.xlu0 %v339
      %v341 = vpop.xlane.xlu0 %340
      %v342 = vsel %vm205, %v324, 0.0
      %343 = vadd.xlane.f32.xlu0 %v342
      %v344 = vpop.xlane.xlu0 %343
      %v345 = vsel %vm205, %v325, 0.0
      %346 = vadd.xlane.f32.xlu0 %v345
      %v347 = vpop.xlane.xlu0 %346
      %v348 = vsel %vm205, %v326, 0.0
      %349 = vadd.xlane.f32.xlu0 %v348
      %v350 = vpop.xlane.xlu0 %349
      %v351 = vsub.f32 %v329, %v294
      %v352 = vsub.f32 %v332, %v295
      %v353 = vsub.f32 %v335, %v296
      %v354 = vsub.f32 %v338, %v297
      %v355 = vsub.f32 %v341, %v298
      %v356 = vsub.f32 %v344, %v299
      %v357 = vsub.f32 %v347, %v300
      %v358 = vsub.f32 %v350, %v301
      %367 = vset.pattern.permute.xlu0 0
      %368 = vperm.xlu0 %367, %v302
      %v369 = vpop.permute.xlu0 %368
      %370 = vset.pattern.permute.xlu0 0
      %371 = vperm.xlu0 %370, %v303
      %v372 = vpop.permute.xlu0 %371
      %373 = vset.pattern.permute.xlu0 0
      %374 = vperm.xlu0 %373, %v304
      %v375 = vpop.permute.xlu0 %374
      %376 = vset.pattern.permute.xlu0 0
      %377 = vperm.xlu0 %376, %v305
      %v378 = vpop.permute.xlu0 %377
      %379 = vset.pattern.permute.xlu0 0
      %380 = vperm.xlu0 %379, %v306
      %v381 = vpop.permute.xlu0 %380
      %382 = vset.pattern.permute.xlu0 0
      %383 = vperm.xlu0 %382, %v307
      %v384 = vpop.permute.xlu0 %383
      %385 = vset.pattern.permute.xlu0 0
      %386 = vperm.xlu0 %385, %v308
      %v387 = vpop.permute.xlu0 %386
      %388 = vset.pattern.permute.xlu0 0
      %389 = vperm.xlu0 %388, %v309
      %v390 = vpop.permute.xlu0 %389
      %v391 = vlaneseq
      %v392 = vshrl.u32 %v391, 7
      %v393 = vsub.s32 %v312, %v392
      %v394 = vrot.slane %v369, %v393
      %v395 = vlaneseq
      %v396 = vshrl.u32 %v395, 7
      %v397 = vsub.s32 %v312, %v396
      %v398 = vrot.slane %v372, %v397
      %v399 = vlaneseq
      %v400 = vshrl.u32 %v399, 7
      %v401 = vsub.s32 %v312, %v400
      %v402 = vrot.slane %v375, %v401
      %v403 = vlaneseq
      %v404 = vshrl.u32 %v403, 7
      %v405 = vsub.s32 %v312, %v404
      %v406 = vrot.slane %v378, %v405
      %v407 = vlaneseq
      %v408 = vshrl.u32 %v407, 7
      %v409 = vsub.s32 %v312, %v408
      %v410 = vrot.slane %v381, %v409
      %v411 = vlaneseq
      %v412 = vshrl.u32 %v411, 7
      %v413 = vsub.s32 %v312, %v412
      %v414 = vrot.slane %v384, %v413
      %v415 = vlaneseq
      %v416 = vshrl.u32 %v415, 7
      %v417 = vsub.s32 %v312, %v416
      %v418 = vrot.slane %v387, %v417
      %v419 = vlaneseq
      %v420 = vshrl.u32 %v419, 7
      %v421 = vsub.s32 %v312, %v420
      %v422 = vrot.slane %v390, %v421
      %vm423 = vcmask 1041409
      %v424 = vsel %vm423, %v398, %v394
      %vm425 = vcmask 1042434
      %v426 = vsel %vm425, %v402, %v424
      %vm427 = vcmask 1043459
      %v428 = vsel %vm427, %v406, %v426
      %vm429 = vcmask 1044484
      %v430 = vsel %vm429, %v410, %v428
      %vm431 = vcmask 1045509
      %v432 = vsel %vm431, %v414, %v430
      %vm433 = vcmask 1046534
      %v434 = vsel %vm433, %v418, %v432
      %vm435 = vcmask 1047559
      %v436 = vsel %vm435, %v422, %v434
      %438 = vxpose.xlu0.b32.start [1/16] %v436, 128
      %439 = vxpose.xlu0.b32.cont [2/16] 0.0, 128
      %440 = vxpose.xlu0.b32.cont [3/16] 0.0, 128
      %441 = vxpose.xlu0.b32.cont [4/16] 0.0, 128
      %442 = vxpose.xlu0.b32.cont [5/16] 0.0, 128
      %443 = vxpose.xlu0.b32.cont [6/16] 0.0, 128
      %444 = vxpose.xlu0.b32.cont [7/16] 0.0, 128
      %445 = vxpose.xlu0.b32.cont [8/16] 0.0, 128
      %446 = vxpose.xlu0.b32.cont [9/16] 0.0, 128
      %447 = vxpose.xlu0.b32.cont [10/16] 0.0, 128
      %448 = vxpose.xlu0.b32.cont [11/16] 0.0, 128
      %449 = vxpose.xlu0.b32.cont [12/16] 0.0, 128
      %450 = vxpose.xlu0.b32.cont [13/16] 0.0, 128
      %451 = vxpose.xlu0.b32.cont [14/16] 0.0, 128
      %452 = vxpose.xlu0.b32.cont [15/16] 0.0, 128
      %453 = vxpose.xlu0.b32.end [16/16] 0.0, 128
      %v454 = vpop.trf.xlu0
      %v455 = vpop.trf.xlu0
      %v456 = vpop.trf.xlu0
      %v457 = vpop.trf.xlu0
      %v458 = vpop.trf.xlu0
      %v459 = vpop.trf.xlu0
      %v460 = vpop.trf.xlu0
      %v461 = vpop.trf.xlu0
      %v462 = vpop.trf.xlu0
      %v463 = vpop.trf.xlu0
      %v464 = vpop.trf.xlu0
      %v465 = vpop.trf.xlu0
      %v466 = vpop.trf.xlu0
      %v467 = vpop.trf.xlu0
      %v468 = vpop.trf.xlu0
      %v469 = vpop.trf.xlu0
      %vm470 = vcmask 61440
      %471 = vst.msk [vmem:[#allocation2] sm:$0x1f] %vm470, %v454
      %v480 = vlaneseq
      %v481 = vshrl.u32 %v480, 7
      %v482 = vsub.s32 %v312, %v481
      %v483 = vrot.slane %v351, %v482
      %v484 = vlaneseq
      %v485 = vshrl.u32 %v484, 7
      %v486 = vsub.s32 %v312, %v485
      %v487 = vrot.slane %v352, %v486
      %v488 = vlaneseq
      %v489 = vshrl.u32 %v488, 7
      %v490 = vsub.s32 %v312, %v489
      %v491 = vrot.slane %v353, %v490
      %v492 = vlaneseq
      %v493 = vshrl.u32 %v492, 7
      %v494 = vsub.s32 %v312, %v493
      %v495 = vrot.slane %v354, %v494
      %v496 = vlaneseq
      %v497 = vshrl.u32 %v496, 7
      %v498 = vsub.s32 %v312, %v497
      %v499 = vrot.slane %v355, %v498
      %v500 = vlaneseq
      %v501 = vshrl.u32 %v500, 7
      %v502 = vsub.s32 %v312, %v501
      %v503 = vrot.slane %v356, %v502
      %v504 = vlaneseq
      %v505 = vshrl.u32 %v504, 7
      %v506 = vsub.s32 %v312, %v505
      %v507 = vrot.slane %v357, %v506
      %v508 = vlaneseq
      %v509 = vshrl.u32 %v508, 7
      %v510 = vsub.s32 %v312, %v509
      %v511 = vrot.slane %v358, %v510
      %v512 = vsel %vm423, %v487, %v483
      %v513 = vsel %vm425, %v491, %v512
      %v514 = vsel %vm427, %v495, %v513
      %v515 = vsel %vm429, %v499, %v514
      %v516 = vsel %vm431, %v503, %v515
      %v517 = vsel %vm433, %v507, %v516
      %v518 = vsel %vm435, %v511, %v517
      %520 = vxpose.xlu0.b32.start [1/16] %v518, 128
      %521 = vxpose.xlu0.b32.cont [2/16] 0.0, 128
      %522 = vxpose.xlu0.b32.cont [3/16] 0.0, 128
      %523 = vxpose.xlu0.b32.cont [4/16] 0.0, 128
      %524 = vxpose.xlu0.b32.cont [5/16] 0.0, 128
      %525 = vxpose.xlu0.b32.cont [6/16] 0.0, 128
      %526 = vxpose.xlu0.b32.cont [7/16] 0.0, 128
      %527 = vxpose.xlu0.b32.cont [8/16] 0.0, 128
      %528 = vxpose.xlu0.b32.cont [9/16] 0.0, 128
      %529 = vxpose.xlu0.b32.cont [10/16] 0.0, 128
      %530 = vxpose.xlu0.b32.cont [11/16] 0.0, 128
      %531 = vxpose.xlu0.b32.cont [12/16] 0.0, 128
      %532 = vxpose.xlu0.b32.cont [13/16] 0.0, 128
      %533 = vxpose.xlu0.b32.cont [14/16] 0.0, 128
      %534 = vxpose.xlu0.b32.cont [15/16] 0.0, 128
      %535 = vxpose.xlu0.b32.end [16/16] 0.0, 128
      %v536 = vpop.trf.xlu0
      %v537 = vpop.trf.xlu0
      %v538 = vpop.trf.xlu0
      %v539 = vpop.trf.xlu0
      %v540 = vpop.trf.xlu0
      %v541 = vpop.trf.xlu0
      %v542 = vpop.trf.xlu0
      %v543 = vpop.trf.xlu0
      %v544 = vpop.trf.xlu0
      %v545 = vpop.trf.xlu0
      %v546 = vpop.trf.xlu0
      %v547 = vpop.trf.xlu0
      %v548 = vpop.trf.xlu0
      %v549 = vpop.trf.xlu0
      %v550 = vpop.trf.xlu0
      %v551 = vpop.trf.xlu0
      %552 = vst.msk [vmem:[#allocation3] sm:$0x1f] %vm470, %v536
      %p553 = scmp.eq.s32.totalorder %s30, 0
      // Predicated region
      $region29: #{tpu_custom_call.1} parent=27 // pred_check
        %p554 = pneg %p553
      $region30: #{tpu_custom_call.1} parent=27 // pred_check_branch
        %556 = sbr.rel (%p554) target = $region32
      $region31: #{tpu_custom_call.1} parent=27 // pred_region
        %vm557 = vcmp.eq.s32.totalorder %v312, 0
        %v558 = vsel %vm557, 0.0, -1e+30
        %v559 = vld [vmem:[#allocation2] sm:$0x1]
        %vm560 = vcmask 1047616
        %561 = vrot.lane.b32.xlu0 %v559, 8
        %v562 = vpop.permute.xlu0 %561
        %v563 = vsel %vm560, %v562, %v559
        %564 = vrot.lane.b32.xlu0 %v563, 8
        %v565 = vpop.permute.xlu0 %564
        %v566 = vsel %vm560, %v565, %v559
        %568 = vrot.lane.b32.xlu0 %v566, 121
        %v569 = vpop.permute.xlu0 %568
        %v571 = vsel %vm557, 0.0, %v569
        %vm572 = vcmp.lt.s32.totalorder %v312, 1
        %573 = vrot.lane.b32.xlu0 %v571, 8
        %v574 = vpop.permute.xlu0 %573
        %v575 = vsel %vm560, %v574, %v571
        %576 = vrot.lane.b32.xlu0 %v575, 8
        %v577 = vpop.permute.xlu0 %576
        %v578 = vsel %vm560, %v577, %v571
        %580 = vrot.lane.b32.xlu0 %v578, 121
        %v581 = vpop.permute.xlu0 %580
        %v583 = vsel %vm572, 0.0, %v581
        %584 = vrot.lane.b32.xlu0 %v558, 8
        %v585 = vpop.permute.xlu0 %584
        %v586 = vsel %vm560, %v585, %v558
        %587 = vrot.lane.b32.xlu0 %v586, 8
        %v588 = vpop.permute.xlu0 %587
        %v589 = vsel %vm560, %v588, %v558
        %591 = vrot.lane.b32.xlu0 %v589, 121
        %v592 = vpop.permute.xlu0 %591
        %v594 = vsel %vm572, -1e+30, %v592
        %v595 = vadd.f32 %v583, %v571
        %v596 = vadd.f32 %v594, %v571
        %v597 = vmax.f32 %v596, %v558
        %v598 = vsub.f32 %v596, %v558
        %vm599 = vcmp.ne.f32.partialorder %v598, %v598
        %v600 = vadd.f32 %v596, %v558
        %v601 = vand.u32 2147483647, %v598
        %v602 = vsub.f32 0.0, %v601
        %v603 = vmul.f32 %v602, 1.442695
        %v604 = vpow.pop %v603
        %v605 = vadd.f32 %v604, 1.0
        %v606 = vlog2.pop %v605
        %v607 = vmul.f32 %v606, 0.6931472
        %v608 = vmul.f32 -0.5, %v604
        %v609 = vadd.f32 %v608, 1.0
        %v610 = vmul.f32 %v609, %v604
        %v611 = vand.u32 2147483647, %v604
        %vm612 = vcmp.lt.f32.partialorder %v611, 0.0004427343
        %v613 = vsel %vm612, %v610, %v607
        %v614 = vadd.f32 %v597, %v613
        %v615 = vsel %vm599, %v600, %v614
        %vm616 = vcmp.lt.s32.totalorder %v312, 2
        %617 = vrot.lane.b32.xlu0 %v595, 8
        %v618 = vpop.permute.xlu0 %617
        %v619 = vsel %vm560, %v618, %v595
        %620 = vrot.lane.b32.xlu0 %v619, 8
        %v621 = vpop.permute.xlu0 %620
        %v622 = vsel %vm560, %v621, %v595
        %624 = vrot.lane.b32.xlu0 %v622, 122
        %v625 = vpop.permute.xlu0 %624
        %v627 = vsel %vm616, 0.0, %v625
        %628 = vrot.lane.b32.xlu0 %v615, 8
        %v629 = vpop.permute.xlu0 %628
        %v630 = vsel %vm560, %v629, %v615
        %631 = vrot.lane.b32.xlu0 %v630, 8
        %v632 = vpop.permute.xlu0 %631
        %v633 = vsel %vm560, %v632, %v615
        %635 = vrot.lane.b32.xlu0 %v633, 122
        %v636 = vpop.permute.xlu0 %635
        %v638 = vsel %vm616, -1e+30, %v636
        %v639 = vadd.f32 %v627, %v595
        %v640 = vadd.f32 %v638, %v595
        %v641 = vmax.f32 %v640, %v615
        %v642 = vsub.f32 %v640, %v615
        %vm643 = vcmp.ne.f32.partialorder %v642, %v642
        %v644 = vadd.f32 %v640, %v615
        %v645 = vand.u32 2147483647, %v642
        %v646 = vsub.f32 0.0, %v645
        %v647 = vmul.f32 %v646, 1.442695
        %v648 = vpow.pop %v647
        %v649 = vadd.f32 %v648, 1.0
        %v650 = vlog2.pop %v649
        %v651 = vmul.f32 %v650, 0.6931472
        %v652 = vmul.f32 -0.5, %v648
        %v653 = vadd.f32 %v652, 1.0
        %v654 = vmul.f32 %v653, %v648
        %v655 = vand.u32 2147483647, %v648
        %vm656 = vcmp.lt.f32.partialorder %v655, 0.0004427343
        %v657 = vsel %vm656, %v654, %v651
        %v658 = vadd.f32 %v641, %v657
        %v659 = vsel %vm643, %v644, %v658
        %vm660 = vcmp.lt.s32.totalorder %v312, 4
        %661 = vrot.lane.b32.xlu0 %v659, 8
        %v662 = vpop.permute.xlu0 %661
        %v663 = vsel %vm560, %v662, %v659
        %664 = vrot.lane.b32.xlu0 %v663, 8
        %v665 = vpop.permute.xlu0 %664
        %v666 = vsel %vm560, %v665, %v659
        %668 = vrot.lane.b32.xlu0 %v666, 124
        %v669 = vpop.permute.xlu0 %668
        %v671 = vsel %vm660, -1e+30, %v669
        %v672 = vadd.f32 %v671, %v639
        %v673 = vmax.f32 %v672, %v659
        %v674 = vsub.f32 %v672, %v659
        %vm675 = vcmp.ne.f32.partialorder %v674, %v674
        %v676 = vadd.f32 %v672, %v659
        %v677 = vand.u32 2147483647, %v674
        %v678 = vsub.f32 0.0, %v677
        %v679 = vmul.f32 %v678, 1.442695
        %v680 = vpow.pop %v679
        %v681 = vadd.f32 %v680, 1.0
        %v682 = vlog2.pop %v681
        %v683 = vmul.f32 %v682, 0.6931472
        %v684 = vmul.f32 -0.5, %v680
        %v685 = vadd.f32 %v684, 1.0
        %v686 = vmul.f32 %v685, %v680
        %v687 = vand.u32 2147483647, %v680
        %vm688 = vcmp.lt.f32.partialorder %v687, 0.0004427343
        %v689 = vsel %vm688, %v686, %v683
        %v690 = vadd.f32 %v673, %v689
        %v691 = vsel %vm675, %v676, %v690
        %s692 = sld [smem:[#allocation6 + %s29]]
        %s693 = sld [smem:[#allocation5 + %s29]]
        %s694 = ssub.s32 %s693, 1
        %s695 = sadd.s32 %s692, 1
        // While loop
        $region33: #{tpu_custom_call.1} parent=31 // loop_pre_header
          _
        $region34: #{tpu_custom_call.1} parent=31 // loop_header
          %s697 = sphi 1, %s699
          %p698 = scmp.ge.s32.totalorder %s697, %s695
          %v702 = vphi %v691, %v836
        $region35: #{tpu_custom_call.1} parent=31 // loop_header_branch
          %701 = sbr.rel (%p698) target = $region39
        $region36: #{tpu_custom_call.1} parent=31 // loop_body
          %s703 = ssub.s32 %s697, 1
          %s704 = scalar_lea.vmem [#allocation3], %s703
          %v705 = vld [vmem:[%s704] sm:$0x1]
          %v706 = vadd.f32 %v702, %v705
          %s707 = scalar_lea.vmem [#allocation2], %s697
          %v708 = vld [vmem:[%s707] sm:$0x1]
          %709 = vrot.lane.b32.xlu0 %v708, 8
          %v710 = vpop.permute.xlu0 %709
          %v711 = vsel %vm560, %v710, %v708
          %712 = vrot.lane.b32.xlu0 %v711, 8
          %v713 = vpop.permute.xlu0 %712
          %v714 = vsel %vm560, %v713, %v708
          %716 = vrot.lane.b32.xlu0 %v714, 121
          %v717 = vpop.permute.xlu0 %716
          %v719 = vsel %vm557, 0.0, %v717
          %720 = vrot.lane.b32.xlu0 %v719, 8
          %v721 = vpop.permute.xlu0 %720
          %v722 = vsel %vm560, %v721, %v719
          %723 = vrot.lane.b32.xlu0 %v722, 8
          %v724 = vpop.permute.xlu0 %723
          %v725 = vsel %vm560, %v724, %v719
          %727 = vrot.lane.b32.xlu0 %v725, 121
          %v728 = vpop.permute.xlu0 %727
          %v730 = vsel %vm572, 0.0, %v728
          %731 = vrot.lane.b32.xlu0 %v706, 8
          %v732 = vpop.permute.xlu0 %731
          %v733 = vsel %vm560, %v732, %v706
          %734 = vrot.lane.b32.xlu0 %v733, 8
          %v735 = vpop.permute.xlu0 %734
          %v736 = vsel %vm560, %v735, %v706
          %738 = vrot.lane.b32.xlu0 %v736, 121
          %v739 = vpop.permute.xlu0 %738
          %v741 = vsel %vm572, -1e+30, %v739
          %v742 = vadd.f32 %v730, %v719
          %v743 = vadd.f32 %v741, %v719
          %v744 = vmax.f32 %v743, %v706
          %v745 = vsub.f32 %v743, %v706
          %vm746 = vcmp.ne.f32.partialorder %v745, %v745
          %v747 = vadd.f32 %v743, %v706
          %v748 = vand.u32 2147483647, %v745
          %v749 = vsub.f32 0.0, %v748
          %v750 = vmul.f32 %v749, 1.442695
          %v751 = vpow.pop %v750
          %v752 = vadd.f32 %v751, 1.0
          %v753 = vlog2.pop %v752
          %v754 = vmul.f32 %v753, 0.6931472
          %v755 = vmul.f32 -0.5, %v751
          %v756 = vadd.f32 %v755, 1.0
          %v757 = vmul.f32 %v756, %v751
          %v758 = vand.u32 2147483647, %v751
          %vm759 = vcmp.lt.f32.partialorder %v758, 0.0004427343
          %v760 = vsel %vm759, %v757, %v754
          %v761 = vadd.f32 %v744, %v760
          %v762 = vsel %vm746, %v747, %v761
          %763 = vrot.lane.b32.xlu0 %v742, 8
          %v764 = vpop.permute.xlu0 %763
          %v765 = vsel %vm560, %v764, %v742
          %766 = vrot.lane.b32.xlu0 %v765, 8
          %v767 = vpop.permute.xlu0 %766
          %v768 = vsel %vm560, %v767, %v742
          %770 = vrot.lane.b32.xlu0 %v768, 122
          %v771 = vpop.permute.xlu0 %770
          %v773 = vsel %vm616, 0.0, %v771
          %774 = vrot.lane.b32.xlu0 %v762, 8
          %v775 = vpop.permute.xlu0 %774
          %v776 = vsel %vm560, %v775, %v762
          %777 = vrot.lane.b32.xlu0 %v776, 8
          %v778 = vpop.permute.xlu0 %777
          %v779 = vsel %vm560, %v778, %v762
          %781 = vrot.lane.b32.xlu0 %v779, 122
          %v782 = vpop.permute.xlu0 %781
          %v784 = vsel %vm616, -1e+30, %v782
          %v785 = vadd.f32 %v773, %v742
          %v786 = vadd.f32 %v784, %v742
          %v787 = vmax.f32 %v786, %v762
          %v788 = vsub.f32 %v786, %v762
          %vm789 = vcmp.ne.f32.partialorder %v788, %v788
          %v790 = vadd.f32 %v786, %v762
          %v791 = vand.u32 2147483647, %v788
          %v792 = vsub.f32 0.0, %v791
          %v793 = vmul.f32 %v792, 1.442695
          %v794 = vpow.pop %v793
          %v795 = vadd.f32 %v794, 1.0
          %v796 = vlog2.pop %v795
          %v797 = vmul.f32 %v796, 0.6931472
          %v798 = vmul.f32 -0.5, %v794
          %v799 = vadd.f32 %v798, 1.0
          %v800 = vmul.f32 %v799, %v794
          %v801 = vand.u32 2147483647, %v794
          %vm802 = vcmp.lt.f32.partialorder %v801, 0.0004427343
          %v803 = vsel %vm802, %v800, %v797
          %v804 = vadd.f32 %v787, %v803
          %v805 = vsel %vm789, %v790, %v804
          %806 = vrot.lane.b32.xlu0 %v805, 8
          %v807 = vpop.permute.xlu0 %806
          %v808 = vsel %vm560, %v807, %v805
          %809 = vrot.lane.b32.xlu0 %v808, 8
          %v810 = vpop.permute.xlu0 %809
          %v811 = vsel %vm560, %v810, %v805
          %813 = vrot.lane.b32.xlu0 %v811, 124
          %v814 = vpop.permute.xlu0 %813
          %v816 = vsel %vm660, -1e+30, %v814
          %v817 = vadd.f32 %v816, %v785
          %v818 = vmax.f32 %v817, %v805
          %v819 = vsub.f32 %v817, %v805
          %vm820 = vcmp.ne.f32.partialorder %v819, %v819
          %v821 = vadd.f32 %v817, %v805
          %v822 = vand.u32 2147483647, %v819
          %v823 = vsub.f32 0.0, %v822
          %v824 = vmul.f32 %v823, 1.442695
          %v825 = vpow.pop %v824
          %v826 = vadd.f32 %v825, 1.0
          %v827 = vlog2.pop %v826
          %v828 = vmul.f32 %v827, 0.6931472
          %v829 = vmul.f32 -0.5, %v825
          %v830 = vadd.f32 %v829, 1.0
          %v831 = vmul.f32 %v830, %v825
          %v832 = vand.u32 2147483647, %v825
          %vm833 = vcmp.lt.f32.partialorder %v832, 0.0004427343
          %v834 = vsel %vm833, %v831, %v828
          %v835 = vadd.f32 %v818, %v834
          %v836 = vsel %vm820, %v821, %v835
        $region37: #{tpu_custom_call.1} parent=31 // loop_footer
          %s699 = sadd.s32 %s697, 1
        $region38: #{tpu_custom_call.1} parent=31 // loop_footer_branch
          %696 = sbr.rel target = $region34
        $region39: #{tpu_custom_call.1} parent=31 // loop_exit
          _
        %s837 = scalar_lea.vmem [#allocation2], %s692
        %v838 = vld [vmem:[%s837] sm:$0x1]
        %v839 = vstv %s694
        %vm840 = vcmp.eq.s32.totalorder %v312, %v839
        %v841 = vadd.f32 %v702, %v838
        %v842 = vsel %vm840, %v841, 0.0
        %vm843 = vcmask 57344
        %v844 = vsel %vm843, %v842, 0.0
        %845 = vadd.xlane.f32.xlu0 %v844
        %v846 = vpop.xlane.xlu0 %845
        %v847 = vrot.slane %v846, 4
        %v848 = vadd.f32 %v846, %v847
        %v849 = vrot.slane %v848, 2
        %v850 = vadd.f32 %v848, %v849
        %v851 = vrot.slane %v850, 1
        %v852 = vadd.f32 %v850, %v851
        %s853 = vtos %v852
        %s854 = ssub.f32 0.0, %s853
        %v855 = vstv %s854
        %vm856 = vcmask 0
        %857 = vst.msk [vmem:[%s196] sm:$0x1] %vm856, %v855
      $region32: #{tpu_custom_call.1} parent=27 // pred_fallthru
        _
      %p858 = scmp.lt.s32.totalorder %s29, 1
      %s859 = scalar_select %p858, %s29, 1
      %s860 = scalar_lea.vmem %s4, %s859
      // Predicated region
      $region40: #{tpu_custom_call.1} parent=27 // pred_check
        %p861 = pneg %p109
      $region41: #{tpu_custom_call.1} parent=27 // pred_check_branch
        %863 = sbr.rel (%p861) target = $region43
      $region42: #{tpu_custom_call.1} parent=27 // pred_region
        _
      $region43: #{tpu_custom_call.1} parent=27 // pred_fallthru
        _
    $region28: #{tpu_custom_call.1} parent=5 // pred_fallthru
      _
    %p864 = scmp.le.s32.totalorder 2, %s20
    // Predicated region
    $region44: #{tpu_custom_call.1} parent=5 // pred_check
      %p865 = pneg %p864
    $region45: #{tpu_custom_call.1} parent=5 // pred_check_branch
      %867 = sbr.rel (%p865) target = $region47
    $region46: #{tpu_custom_call.1} parent=5 // pred_region
      %s868 = ssub.s32 %s20, 2
      // Predicated region
      $region48: #{tpu_custom_call.1} parent=46 // pred_check
        %p869 = pneg %p115
      $region49: #{tpu_custom_call.1} parent=46 // pred_check_branch
        %871 = sbr.rel (%p869) target = $region51
      $region50: #{tpu_custom_call.1} parent=46 // pred_region
        %p872 = scmp.lt.s32.totalorder %s31, 1
        %s873 = scalar_select %p872, %s31, 1
        %s874 = scalar_lea.vmem %s4, %s873
      $region51: #{tpu_custom_call.1} parent=46 // pred_fallthru
        _
    $region47: #{tpu_custom_call.1} parent=5 // pred_fallthru
      _
  $region6: #{tpu_custom_call.1} parent=0 // loop_footer
    %s24 = sadd.s32 1, %s20
  $region7: #{tpu_custom_call.1} parent=0 // loop_footer_branch
    %19 = sbr.rel target = $region3
  $region8: #{tpu_custom_call.1} parent=0 // loop_exit
    _

</llo_original>
